<compile_context>
chip_gen: v7x
topology: tpu7x:2x2x1
jax: 0.10.0
libtpu: 0.0.40
codegen_flags: <defaults>
</compile_context>

<pallas_src>
import jax
import jax.numpy as jnp
from jax import lax
from jax.experimental import pallas as pl
from jax.experimental.pallas import tpu as pltpu

HIDDEN_SIZE = 10
INPUT_SIZE = 1
OUTPUT_SIZE = 1

LANE = 128     # lane-dense padding for hidden / output dims
SUBLANE = 8    # sublane padding for batch dim


def rnn_kernel(xw_ref, whh_ref, wfc_ref, bfc_ref, out_ref):
    # xw_ref:  (T, Bp, Hp) f32   precomputed x@Wih^T + (b_ih+b_hh), padded
    # whh_ref: (Hp, Hp)    bf16  Whh^T zero-padded
    # wfc_ref: (Hp, Op)    bf16  Wfc^T zero-padded
    # bfc_ref: (1, Op)     f32   fc bias zero-padded
    # out_ref: (Bp, Op)    f32
    T, Bp, Hp = xw_ref.shape

    whh = whh_ref[...]  # loop-invariant; loaded once, hoisted above the recurrence

    def step(t, h):
        # Serial critical path per step: one bf16 MXU matmul (f32 accumulate)
        # + one VPU add + tanh (EUP).
        return jnp.tanh(
            xw_ref[t]
            + jnp.dot(h.astype(jnp.bfloat16), whh,
                      preferred_element_type=jnp.float32))

    h0 = jnp.zeros((Bp, Hp), dtype=jnp.float32)
    hT = lax.fori_loop(0, T, step, h0, unroll=True)  # T=8: full unroll is fine

    y = jnp.dot(hT.astype(jnp.bfloat16), wfc_ref[...],
                preferred_element_type=jnp.float32) + bfc_ref[...]
    out_ref[...] = y.astype(out_ref.dtype)  # (Bp, 128) lane-dense, unmasked store


@jax.jit
def rnn_forward(x, params):
    """x: (B, T, I) batch-first (matches PyTorch). Returns (B, O)."""
    w_ih, w_hh, b_ih, b_hh, w_fc, b_fc = params
    B, T, I = x.shape
    H = w_hh.shape[0]
    O = w_fc.shape[0]

    Hp = max(LANE, ((H + LANE - 1) // LANE) * LANE)
    Op = max(LANE, ((O + LANE - 1) // LANE) * LANE)
    Bp = max(SUBLANE, ((B + SUBLANE - 1) // SUBLANE) * SUBLANE)

    xf = x.astype(jnp.float32)
    # Hoist the input projection + combined bias out of the recurrence:
    # one batched (B*T, I)x(I, H) matmul instead of T degenerate ones in the loop.
    xw = jnp.einsum("bti,hi->bth", xf, w_ih.astype(jnp.float32)) \
        + (b_ih + b_hh).astype(jnp.float32)                    # (B, T, H)
    xw_tm = jnp.transpose(xw, (1, 0, 2))                        # (T, B, H) time-major
    xw_tm = jnp.pad(xw_tm, ((0, 0), (0, Bp - B), (0, Hp - H)))  # (T, Bp, Hp)

    # Zero-padded, pre-transposed weights in bf16 (MXU-native).  Padding lanes
    # stay exactly zero through cast/tanh/matmul, so results are unaffected.
    whh_t = jnp.zeros((Hp, Hp), jnp.float32).at[:H, :H].set(
        jnp.transpose(w_hh).astype(jnp.float32)).astype(jnp.bfloat16)
    wfc_t = jnp.zeros((Hp, Op), jnp.float32).at[:H, :O].set(
        jnp.transpose(w_fc).astype(jnp.float32)).astype(jnp.bfloat16)
    bfc = jnp.zeros((1, Op), jnp.float32).at[0, :O].set(b_fc.astype(jnp.float32))

    vmem = pl.BlockSpec(memory_space=pltpu.MemorySpace.VMEM)
    out_p = pl.pallas_call(
        rnn_kernel,
        out_shape=jax.ShapeDtypeStruct((Bp, Op), jnp.float32),
        in_specs=[vmem, vmem, vmem, vmem],
        out_specs=vmem,
    )(xw_tm, whh_t, wfc_t, bfc)

    return out_p[:B, :O]


def init_params(key, input_size, hidden_size, output_size):
    # Deterministic init mimicking PyTorch's U(-1/sqrt(H), 1/sqrt(H)).
    ks = jax.random.split(key, 6)
    s = 1.0 / jnp.sqrt(hidden_size)
    w_ih = jax.random.uniform(ks[0], (hidden_size, input_size), jnp.float32, -s, s)
    w_hh = jax.random.uniform(ks[1], (hidden_size, hidden_size), jnp.float32, -s, s)
    b_ih = jax.random.uniform(ks[2], (hidden_size,), jnp.float32, -s, s)
    b_hh = jax.random.uniform(ks[3], (hidden_size,), jnp.float32, -s, s)
    w_fc = jax.random.uniform(ks[4], (output_size, hidden_size), jnp.float32, -s, s)
    b_fc = jax.random.uniform(ks[5], (output_size,), jnp.float32, -s, s)
    return (w_ih, w_hh, b_ih, b_hh, w_fc, b_fc)


def reference_forward(x, params):
    # Pure-JAX f32 reference of the PyTorch forward (for sanity check).
    w_ih, w_hh, b_ih, b_hh, w_fc, b_fc = params
    B, T, I = x.shape
    H = w_hh.shape[0]
    h = jnp.zeros((B, H), jnp.float32)
    for t in range(T):
        h = jnp.tanh(x[:, t, :] @ w_ih.T + b_ih + h @ w_hh.T + b_hh)
    return h @ w_fc.T + b_fc


if __name__ == "__main__":
    key = jax.random.PRNGKey(0)
    k_x, k_p = jax.random.split(key)

    B, T = 2, 8
    x = jax.random.normal(k_x, (B, T, INPUT_SIZE), dtype=jnp.float32)
    params = init_params(k_p, INPUT_SIZE, HIDDEN_SIZE, OUTPUT_SIZE)

    out = rnn_forward(x, params)
    out = jax.block_until_ready(out)

    ref = reference_forward(x, params)
    assert out.shape == (B, OUTPUT_SIZE)
    # Tolerance loosened vs. f32 reference because the recurrent/FC matmuls
    # use bf16 operands (f32 accumulation); tanh-bounded h keeps error ~1e-3.
    assert jnp.allclose(out, ref, atol=1e-2, rtol=1e-2)

    print("KERNEL_OK")
</pallas_src>

<mosaic_0001>
module attributes {stable_mosaic.version = 11 : i64} {
  func.func @rnn_kernel(%arg0: memref<8x8x128xf32, #tpu.memory_space<vmem>>, %arg1: memref<128x128xbf16, #tpu.memory_space<vmem>>, %arg2: memref<128x128xbf16, #tpu.memory_space<vmem>>, %arg3: memref<1x128xf32, #tpu.memory_space<vmem>>, %arg4: memref<8x128xf32, #tpu.memory_space<vmem>>) attributes {dimension_semantics = [], scalar_prefetch = 0 : i64, scratch_operands = 0 : i64, tpu.core_type = #tpu.core_type<tc>} {
    %c0 = arith.constant 0 : index
    %c0_0 = arith.constant 0 : index
    %0 = vector.load %arg1[%c0, %c0_0] : memref<128x128xbf16, #tpu.memory_space<vmem>>, vector<128x128xbf16>
    %cst = arith.constant 0.000000e+00 : f32
    %1 = vector.broadcast %cst : f32 to vector<8x128xf32>
    %c0_i32 = arith.constant 0 : i32
    %2 = arith.index_cast %c0_i32 : i32 to index
    %c0_1 = arith.constant 0 : index
    %c0_2 = arith.constant 0 : index
    %3 = vector.load %arg0[%2, %c0_1, %c0_2] : memref<8x8x128xf32, #tpu.memory_space<vmem>>, vector<1x8x128xf32>
    %4 = vector.shape_cast %3 : vector<1x8x128xf32> to vector<8x128xf32>
    %5 = arith.truncf %1 : vector<8x128xf32> to vector<8x128xbf16>
    %cst_3 = arith.constant dense<0.000000e+00> : vector<8x128xf32>
    %6 = tpu.matmul %5, %0, %cst_3 {dimension_numbers = #tpu.dot_dimension_numbers<[1], [0], [0], [1], [0, 0, 1, 1], [], []>} : vector<8x128xbf16>, vector<128x128xbf16>, vector<8x128xf32> -> vector<8x128xf32>
    %7 = arith.addf %4, %6 : vector<8x128xf32>
    %8 = math.tanh %7 : vector<8x128xf32>
    %c1_i32 = arith.constant 1 : i32
    %9 = arith.index_cast %c1_i32 : i32 to index
    %c0_4 = arith.constant 0 : index
    %c0_5 = arith.constant 0 : index
    %10 = vector.load %arg0[%9, %c0_4, %c0_5] : memref<8x8x128xf32, #tpu.memory_space<vmem>>, vector<1x8x128xf32>
    %11 = vector.shape_cast %10 : vector<1x8x128xf32> to vector<8x128xf32>
    %12 = arith.truncf %8 : vector<8x128xf32> to vector<8x128xbf16>
    %cst_6 = arith.constant dense<0.000000e+00> : vector<8x128xf32>
    %13 = tpu.matmul %12, %0, %cst_6 {dimension_numbers = #tpu.dot_dimension_numbers<[1], [0], [0], [1], [0, 0, 1, 1], [], []>} : vector<8x128xbf16>, vector<128x128xbf16>, vector<8x128xf32> -> vector<8x128xf32>
    %14 = arith.addf %11, %13 : vector<8x128xf32>
    %15 = math.tanh %14 : vector<8x128xf32>
    %c2_i32 = arith.constant 2 : i32
    %16 = arith.index_cast %c2_i32 : i32 to index
    %c0_7 = arith.constant 0 : index
    %c0_8 = arith.constant 0 : index
    %17 = vector.load %arg0[%16, %c0_7, %c0_8] : memref<8x8x128xf32, #tpu.memory_space<vmem>>, vector<1x8x128xf32>
    %18 = vector.shape_cast %17 : vector<1x8x128xf32> to vector<8x128xf32>
    %19 = arith.truncf %15 : vector<8x128xf32> to vector<8x128xbf16>
    %cst_9 = arith.constant dense<0.000000e+00> : vector<8x128xf32>
    %20 = tpu.matmul %19, %0, %cst_9 {dimension_numbers = #tpu.dot_dimension_numbers<[1], [0], [0], [1], [0, 0, 1, 1], [], []>} : vector<8x128xbf16>, vector<128x128xbf16>, vector<8x128xf32> -> vector<8x128xf32>
    %21 = arith.addf %18, %20 : vector<8x128xf32>
    %22 = math.tanh %21 : vector<8x128xf32>
    %c3_i32 = arith.constant 3 : i32
    %23 = arith.index_cast %c3_i32 : i32 to index
    %c0_10 = arith.constant 0 : index
    %c0_11 = arith.constant 0 : index
    %24 = vector.load %arg0[%23, %c0_10, %c0_11] : memref<8x8x128xf32, #tpu.memory_space<vmem>>, vector<1x8x128xf32>
    %25 = vector.shape_cast %24 : vector<1x8x128xf32> to vector<8x128xf32>
    %26 = arith.truncf %22 : vector<8x128xf32> to vector<8x128xbf16>
    %cst_12 = arith.constant dense<0.000000e+00> : vector<8x128xf32>
    %27 = tpu.matmul %26, %0, %cst_12 {dimension_numbers = #tpu.dot_dimension_numbers<[1], [0], [0], [1], [0, 0, 1, 1], [], []>} : vector<8x128xbf16>, vector<128x128xbf16>, vector<8x128xf32> -> vector<8x128xf32>
    %28 = arith.addf %25, %27 : vector<8x128xf32>
    %29 = math.tanh %28 : vector<8x128xf32>
    %c4_i32 = arith.constant 4 : i32
    %30 = arith.index_cast %c4_i32 : i32 to index
    %c0_13 = arith.constant 0 : index
    %c0_14 = arith.constant 0 : index
    %31 = vector.load %arg0[%30, %c0_13, %c0_14] : memref<8x8x128xf32, #tpu.memory_space<vmem>>, vector<1x8x128xf32>
    %32 = vector.shape_cast %31 : vector<1x8x128xf32> to vector<8x128xf32>
    %33 = arith.truncf %29 : vector<8x128xf32> to vector<8x128xbf16>
    %cst_15 = arith.constant dense<0.000000e+00> : vector<8x128xf32>
    %34 = tpu.matmul %33, %0, %cst_15 {dimension_numbers = #tpu.dot_dimension_numbers<[1], [0], [0], [1], [0, 0, 1, 1], [], []>} : vector<8x128xbf16>, vector<128x128xbf16>, vector<8x128xf32> -> vector<8x128xf32>
    %35 = arith.addf %32, %34 : vector<8x128xf32>
    %36 = math.tanh %35 : vector<8x128xf32>
    %c5_i32 = arith.constant 5 : i32
    %37 = arith.index_cast %c5_i32 : i32 to index
    %c0_16 = arith.constant 0 : index
    %c0_17 = arith.constant 0 : index
    %38 = vector.load %arg0[%37, %c0_16, %c0_17] : memref<8x8x128xf32, #tpu.memory_space<vmem>>, vector<1x8x128xf32>
    %39 = vector.shape_cast %38 : vector<1x8x128xf32> to vector<8x128xf32>
    %40 = arith.truncf %36 : vector<8x128xf32> to vector<8x128xbf16>
    %cst_18 = arith.constant dense<0.000000e+00> : vector<8x128xf32>
    %41 = tpu.matmul %40, %0, %cst_18 {dimension_numbers = #tpu.dot_dimension_numbers<[1], [0], [0], [1], [0, 0, 1, 1], [], []>} : vector<8x128xbf16>, vector<128x128xbf16>, vector<8x128xf32> -> vector<8x128xf32>
    %42 = arith.addf %39, %41 : vector<8x128xf32>
    %43 = math.tanh %42 : vector<8x128xf32>
    %c6_i32 = arith.constant 6 : i32
    %44 = arith.index_cast %c6_i32 : i32 to index
    %c0_19 = arith.constant 0 : index
    %c0_20 = arith.constant 0 : index
    %45 = vector.load %arg0[%44, %c0_19, %c0_20] : memref<8x8x128xf32, #tpu.memory_space<vmem>>, vector<1x8x128xf32>
    %46 = vector.shape_cast %45 : vector<1x8x128xf32> to vector<8x128xf32>
    %47 = arith.truncf %43 : vector<8x128xf32> to vector<8x128xbf16>
    %cst_21 = arith.constant dense<0.000000e+00> : vector<8x128xf32>
    %48 = tpu.matmul %47, %0, %cst_21 {dimension_numbers = #tpu.dot_dimension_numbers<[1], [0], [0], [1], [0, 0, 1, 1], [], []>} : vector<8x128xbf16>, vector<128x128xbf16>, vector<8x128xf32> -> vector<8x128xf32>
    %49 = arith.addf %46, %48 : vector<8x128xf32>
    %50 = math.tanh %49 : vector<8x128xf32>
    %c7_i32 = arith.constant 7 : i32
    %51 = arith.index_cast %c7_i32 : i32 to index
    %c0_22 = arith.constant 0 : index
    %c0_23 = arith.constant 0 : index
    %52 = vector.load %arg0[%51, %c0_22, %c0_23] : memref<8x8x128xf32, #tpu.memory_space<vmem>>, vector<1x8x128xf32>
    %53 = vector.shape_cast %52 : vector<1x8x128xf32> to vector<8x128xf32>
    %54 = arith.truncf %50 : vector<8x128xf32> to vector<8x128xbf16>
    %cst_24 = arith.constant dense<0.000000e+00> : vector<8x128xf32>
    %55 = tpu.matmul %54, %0, %cst_24 {dimension_numbers = #tpu.dot_dimension_numbers<[1], [0], [0], [1], [0, 0, 1, 1], [], []>} : vector<8x128xbf16>, vector<128x128xbf16>, vector<8x128xf32> -> vector<8x128xf32>
    %56 = arith.addf %53, %55 : vector<8x128xf32>
    %57 = math.tanh %56 : vector<8x128xf32>
    %c8_i32 = arith.constant 8 : i32
    %58 = arith.truncf %57 : vector<8x128xf32> to vector<8x128xbf16>
    %c0_25 = arith.constant 0 : index
    %c0_26 = arith.constant 0 : index
    %59 = vector.load %arg2[%c0_25, %c0_26] : memref<128x128xbf16, #tpu.memory_space<vmem>>, vector<128x128xbf16>
    %cst_27 = arith.constant dense<0.000000e+00> : vector<8x128xf32>
    %60 = tpu.matmul %58, %59, %cst_27 {dimension_numbers = #tpu.dot_dimension_numbers<[1], [0], [0], [1], [0, 0, 1, 1], [], []>} : vector<8x128xbf16>, vector<128x128xbf16>, vector<8x128xf32> -> vector<8x128xf32>
    %c0_28 = arith.constant 0 : index
    %c0_29 = arith.constant 0 : index
    %61 = vector.load %arg3[%c0_28, %c0_29] : memref<1x128xf32, #tpu.memory_space<vmem>>, vector<1x128xf32>
    %62 = vector.broadcast %61 : vector<1x128xf32> to vector<8x128xf32>
    %63 = arith.addf %60, %62 : vector<8x128xf32>
    %c0_30 = arith.constant 0 : index
    %c0_31 = arith.constant 0 : index
    %64 = vector.load %arg4[%c0_30, %c0_31] : memref<8x128xf32, #tpu.memory_space<vmem>>, vector<8x128xf32>
    tpu.vector_store %arg4[%c0_30, %c0_31], %63 {strides = array<i32>} : memref<8x128xf32, #tpu.memory_space<vmem>>, vector<8x128xf32>,
    return
  }
}

</mosaic_0001>

<llo_original>
// kernel: rnn_forward.1
$region0: #{rnn_forward.1}
  #allocation0 [shape = 'u32[]', space=smem, size = 0x4, offset = 0x4, fixed_abs, tag = 'smem constant byte address 0x4 - core index']
  #allocation1 [shape = 'u32[144,128]{1,0:T(1,128)}', space=vmem, size = 0x12000, scoped, tag = 'internal scratch']
  %s0 = inlined_call_operand.vmem [shape: f32[8,8,128], index: 0, kind: input, shape index: {}]
  %s1 = inlined_call_operand.vmem [shape: bf16[128,128], index: 1, kind: input, shape index: {}]
  %s2 = inlined_call_operand.vmem [shape: bf16[128,128], index: 2, kind: input, shape index: {}]
  %s3 = inlined_call_operand.vmem [shape: f32[1,128], index: 3, kind: input, shape index: {}]
  %s4 = inlined_call_operand.vmem [shape: f32[8,128], index: 4, kind: output, shape index: {}]
  %s5 = sld [smem:[#allocation0]]
  $region26: #{rnn_forward.1} parent=0
    _
  %s7 = ssub.s32 1, %s5
  %s8 = scalar_select 0, %s7, %s5
  // Predicated region
  $region2: #{rnn_forward.1} parent=0 // pred_check
    _
  $region3: #{rnn_forward.1} parent=0 // pred_check_branch
    %10 = sbr.rel (0) target = $region5
  $region4: #{rnn_forward.1} parent=0 // pred_region
    _
  $region5: #{rnn_forward.1} parent=0 // pred_fallthru
    _
  // Predicated region
  $region6: #{rnn_forward.1} parent=0 // pred_check
    _
  $region7: #{rnn_forward.1} parent=0 // pred_check_branch
    %12 = sbr.rel (0) target = $region9
  $region8: #{rnn_forward.1} parent=0 // pred_region
    _
  $region9: #{rnn_forward.1} parent=0 // pred_fallthru
    _
  // Predicated region
  $region10: #{rnn_forward.1} parent=0 // pred_check
    _
  $region11: #{rnn_forward.1} parent=0 // pred_check_branch
    %14 = sbr.rel (0) target = $region13
  $region12: #{rnn_forward.1} parent=0 // pred_region
    _
  $region13: #{rnn_forward.1} parent=0 // pred_fallthru
    _
  // Predicated region
  $region14: #{rnn_forward.1} parent=0 // pred_check
    _
  $region15: #{rnn_forward.1} parent=0 // pred_check_branch
    %16 = sbr.rel (0) target = $region17
  $region16: #{rnn_forward.1} parent=0 // pred_region
    _
  $region17: #{rnn_forward.1} parent=0 // pred_fallthru
    _
  %v18 = vld [vmem:[%s1] sm:$0xf]
  %v19 = vld [vmem:[%s1 + $0x4] sm:$0xf]
  %v20 = vld [vmem:[%s1 + $0x8] sm:$0xf]
  %v21 = vld [vmem:[%s1 + $0xc] sm:$0xf]
  %v22 = vld [vmem:[%s1 + $0x10] sm:$0xf]
  %v23 = vld [vmem:[%s1 + $0x14] sm:$0xf]
  %v24 = vld [vmem:[%s1 + $0x18] sm:$0xf]
  %v25 = vld [vmem:[%s1 + $0x1c] sm:$0xf]
  %v26 = vld [vmem:[%s1 + $0x20] sm:$0xf]
  %v27 = vld [vmem:[%s1 + $0x24] sm:$0xf]
  %v28 = vld [vmem:[%s1 + $0x28] sm:$0xf]
  %v29 = vld [vmem:[%s1 + $0x2c] sm:$0xf]
  %v30 = vld [vmem:[%s1 + $0x30] sm:$0xf]
  %v31 = vld [vmem:[%s1 + $0x34] sm:$0xf]
  %v32 = vld [vmem:[%s1 + $0x38] sm:$0xf]
  %v33 = vld [vmem:[%s1 + $0x3c] sm:$0xf]
  %v34 = vld [vmem:[%s0] sm:$0xff]
  %v51 = vunpack.c.l.b16 %v18
  %v52 = vunpack.c.l.b16 %v19
  %v53 = vunpack.c.l.b16 %v20
  %v54 = vunpack.c.l.b16 %v21
  %v55 = vunpack.c.l.b16 %v22
  %v56 = vunpack.c.l.b16 %v23
  %v57 = vunpack.c.l.b16 %v24
  %v58 = vunpack.c.l.b16 %v25
  %v59 = vunpack.c.l.b16 %v26
  %v60 = vunpack.c.l.b16 %v27
  %v61 = vunpack.c.l.b16 %v28
  %v62 = vunpack.c.l.b16 %v29
  %v63 = vunpack.c.l.b16 %v30
  %v64 = vunpack.c.l.b16 %v31
  %v65 = vunpack.c.l.b16 %v32
  %v66 = vunpack.c.l.b16 %v33
  %v67 = vpack.c.b16 %v52, %v51
  %v68 = vpack.c.b16 %v54, %v53
  %v69 = vpack.c.b16 %v56, %v55
  %v70 = vpack.c.b16 %v58, %v57
  %v71 = vpack.c.b16 %v60, %v59
  %v72 = vpack.c.b16 %v62, %v61
  %v73 = vpack.c.b16 %v64, %v63
  %v74 = vpack.c.b16 %v66, %v65
  %83 = vmatprep.subr.bf16.mxu0 0
  %84 = vmatpush1.bf16.msra.mxu0 %v67
  %85 = vmatprep.subr.bf16.mxu0 0
  %86 = vmatpush1.bf16.msra.mxu0 %v68
  %87 = vmatprep.subr.bf16.mxu0 0
  %88 = vmatpush1.bf16.msra.mxu0 %v69
  %89 = vmatprep.subr.bf16.mxu0 0
  %90 = vmatpush1.bf16.msra.mxu0 %v70
  %91 = vmatprep.subr.bf16.mxu0 0
  %92 = vmatpush1.bf16.msra.mxu0 %v71
  %93 = vmatprep.subr.bf16.mxu0 0
  %94 = vmatpush1.bf16.msra.mxu0 %v72
  %95 = vmatprep.subr.bf16.mxu0 0
  %96 = vmatpush1.bf16.msra.mxu0 %v73
  %97 = vmatprep.subr.bf16.mxu0 0
  %98 = vmatpush1.bf16.msra.mxu0 %v74
  %99 = vmatprep.subr.bf16.mxu0 0
  %100 = vmatpush1.bf16.msra.mxu0 0
  %101 = vmatprep.subr.bf16.mxu0 0
  %102 = vmatpush1.bf16.msra.mxu0 0
  %103 = vmatprep.subr.bf16.mxu0 0
  %104 = vmatpush1.bf16.msra.mxu0 0
  %105 = vmatprep.subr.bf16.mxu0 0
  %106 = vmatpush1.bf16.msra.mxu0 0
  %107 = vmatprep.subr.bf16.mxu0 0
  %108 = vmatpush1.bf16.msra.mxu0 0
  %109 = vmatprep.subr.bf16.mxu0 0
  %110 = vmatpush1.bf16.msra.mxu0 0
  %111 = vmatprep.subr.bf16.mxu0 0
  %112 = vmatpush1.bf16.msra.mxu0 0
  %113 = vmatprep.subr.bf16.mxu0 0
  %114 = vmatpush1.bf16.msra.mxu0 0
  %115 = vmatprep.mubr.bf16.mxu0 0
  %116 = vmatmul.mubr.bf16.gmra.mrb[0].mxu0 0
  %v117 = vpop.f32.mrb[0].mxu0
  %v118 = vadd.f32 0.0, %v117
  %v119 = vpop.f32.mrb[0].mxu0
  %v120 = vpop.f32.mrb[0].mxu0
  %v121 = vpop.f32.mrb[0].mxu0
  %122 = vdwg.mxu0
  %v123 = vadd.f32 %v34, %v118
  %v124 = vtanh.pop %v123
  %s125 = scalar_lea.vmem %s0, 8
  %v126 = vld [vmem:[%s125] sm:$0xff]
  %v127 = vpack.c.bf16 %v124, %v124
  %128 = vmatprep.subr.bf16.mxu0 0
  %129 = vmatpush1.bf16.msra.mxu0 %v67
  %130 = vmatprep.subr.bf16.mxu0 0
  %131 = vmatpush1.bf16.msra.mxu0 %v68
  %132 = vmatprep.subr.bf16.mxu0 0
  %133 = vmatpush1.bf16.msra.mxu0 %v69
  %134 = vmatprep.subr.bf16.mxu0 0
  %135 = vmatpush1.bf16.msra.mxu0 %v70
  %136 = vmatprep.subr.bf16.mxu0 0
  %137 = vmatpush1.bf16.msra.mxu0 %v71
  %138 = vmatprep.subr.bf16.mxu0 0
  %139 = vmatpush1.bf16.msra.mxu0 %v72
  %140 = vmatprep.subr.bf16.mxu0 0
  %141 = vmatpush1.bf16.msra.mxu0 %v73
  %142 = vmatprep.subr.bf16.mxu0 0
  %143 = vmatpush1.bf16.msra.mxu0 %v74
  %144 = vmatprep.subr.bf16.mxu0 0
  %145 = vmatpush1.bf16.msra.mxu0 0
  %146 = vmatprep.subr.bf16.mxu0 0
  %147 = vmatpush1.bf16.msra.mxu0 0
  %148 = vmatprep.subr.bf16.mxu0 0
  %149 = vmatpush1.bf16.msra.mxu0 0
  %150 = vmatprep.subr.bf16.mxu0 0
  %151 = vmatpush1.bf16.msra.mxu0 0
  %152 = vmatprep.subr.bf16.mxu0 0
  %153 = vmatpush1.bf16.msra.mxu0 0
  %154 = vmatprep.subr.bf16.mxu0 0
  %155 = vmatpush1.bf16.msra.mxu0 0
  %156 = vmatprep.subr.bf16.mxu0 0
  %157 = vmatpush1.bf16.msra.mxu0 0
  %158 = vmatprep.subr.bf16.mxu0 0
  %159 = vmatpush1.bf16.msra.mxu0 0
  %160 = vmatprep.mubr.bf16.mxu0 0
  %161 = vmatmul.mubr.bf16.gmra.mrb[0].mxu0 %v127
  %v162 = vpop.f32.mrb[0].mxu0
  %v163 = vadd.f32 0.0, %v162
  %v164 = vpop.f32.mrb[0].mxu0
  %v165 = vpop.f32.mrb[0].mxu0
  %v166 = vpop.f32.mrb[0].mxu0
  %167 = vdwg.mxu0
  %v168 = vadd.f32 %v126, %v163
  %v169 = vtanh.pop %v168
  %s170 = scalar_lea.vmem %s0, 16
  %v171 = vld [vmem:[%s170] sm:$0xff]
  %v172 = vpack.c.bf16 %v169, %v169
  %173 = vmatprep.subr.bf16.mxu0 0
  %174 = vmatpush1.bf16.msra.mxu0 %v67
  %175 = vmatprep.subr.bf16.mxu0 0
  %176 = vmatpush1.bf16.msra.mxu0 %v68
  %177 = vmatprep.subr.bf16.mxu0 0
  %178 = vmatpush1.bf16.msra.mxu0 %v69
  %179 = vmatprep.subr.bf16.mxu0 0
  %180 = vmatpush1.bf16.msra.mxu0 %v70
  %181 = vmatprep.subr.bf16.mxu0 0
  %182 = vmatpush1.bf16.msra.mxu0 %v71
  %183 = vmatprep.subr.bf16.mxu0 0
  %184 = vmatpush1.bf16.msra.mxu0 %v72
  %185 = vmatprep.subr.bf16.mxu0 0
  %186 = vmatpush1.bf16.msra.mxu0 %v73
  %187 = vmatprep.subr.bf16.mxu0 0
  %188 = vmatpush1.bf16.msra.mxu0 %v74
  %189 = vmatprep.subr.bf16.mxu0 0
  %190 = vmatpush1.bf16.msra.mxu0 0
  %191 = vmatprep.subr.bf16.mxu0 0
  %192 = vmatpush1.bf16.msra.mxu0 0
  %193 = vmatprep.subr.bf16.mxu0 0
  %194 = vmatpush1.bf16.msra.mxu0 0
  %195 = vmatprep.subr.bf16.mxu0 0
  %196 = vmatpush1.bf16.msra.mxu0 0
  %197 = vmatprep.subr.bf16.mxu0 0
  %198 = vmatpush1.bf16.msra.mxu0 0
  %199 = vmatprep.subr.bf16.mxu0 0
  %200 = vmatpush1.bf16.msra.mxu0 0
  %201 = vmatprep.subr.bf16.mxu0 0
  %202 = vmatpush1.bf16.msra.mxu0 0
  %203 = vmatprep.subr.bf16.mxu0 0
  %204 = vmatpush1.bf16.msra.mxu0 0
  %205 = vmatprep.mubr.bf16.mxu0 0
  %206 = vmatmul.mubr.bf16.gmra.mrb[0].mxu0 %v172
  %v207 = vpop.f32.mrb[0].mxu0
  %v208 = vadd.f32 0.0, %v207
  %v209 = vpop.f32.mrb[0].mxu0
  %v210 = vpop.f32.mrb[0].mxu0
  %v211 = vpop.f32.mrb[0].mxu0
  %212 = vdwg.mxu0
  %v213 = vadd.f32 %v171, %v208
  %v214 = vtanh.pop %v213
  %s215 = scalar_lea.vmem %s0, 24
  %v216 = vld [vmem:[%s215] sm:$0xff]
  %v217 = vpack.c.bf16 %v214, %v214
  %218 = vmatprep.subr.bf16.mxu0 0
  %219 = vmatpush1.bf16.msra.mxu0 %v67
  %220 = vmatprep.subr.bf16.mxu0 0
  %221 = vmatpush1.bf16.msra.mxu0 %v68
  %222 = vmatprep.subr.bf16.mxu0 0
  %223 = vmatpush1.bf16.msra.mxu0 %v69
  %224 = vmatprep.subr.bf16.mxu0 0
  %225 = vmatpush1.bf16.msra.mxu0 %v70
  %226 = vmatprep.subr.bf16.mxu0 0
  %227 = vmatpush1.bf16.msra.mxu0 %v71
  %228 = vmatprep.subr.bf16.mxu0 0
  %229 = vmatpush1.bf16.msra.mxu0 %v72
  %230 = vmatprep.subr.bf16.mxu0 0
  %231 = vmatpush1.bf16.msra.mxu0 %v73
  %232 = vmatprep.subr.bf16.mxu0 0
  %233 = vmatpush1.bf16.msra.mxu0 %v74
  %234 = vmatprep.subr.bf16.mxu0 0
  %235 = vmatpush1.bf16.msra.mxu0 0
  %236 = vmatprep.subr.bf16.mxu0 0
  %237 = vmatpush1.bf16.msra.mxu0 0
  %238 = vmatprep.subr.bf16.mxu0 0
  %239 = vmatpush1.bf16.msra.mxu0 0
  %240 = vmatprep.subr.bf16.mxu0 0
  %241 = vmatpush1.bf16.msra.mxu0 0
  %242 = vmatprep.subr.bf16.mxu0 0
  %243 = vmatpush1.bf16.msra.mxu0 0
  %244 = vmatprep.subr.bf16.mxu0 0
  %245 = vmatpush1.bf16.msra.mxu0 0
  %246 = vmatprep.subr.bf16.mxu0 0
  %247 = vmatpush1.bf16.msra.mxu0 0
  %248 = vmatprep.subr.bf16.mxu0 0
  %249 = vmatpush1.bf16.msra.mxu0 0
  %250 = vmatprep.mubr.bf16.mxu0 0
  %251 = vmatmul.mubr.bf16.gmra.mrb[0].mxu0 %v217
  %v252 = vpop.f32.mrb[0].mxu0
  %v253 = vadd.f32 0.0, %v252
  %v254 = vpop.f32.mrb[0].mxu0
  %v255 = vpop.f32.mrb[0].mxu0
  %v256 = vpop.f32.mrb[0].mxu0
  %257 = vdwg.mxu0
  %v258 = vadd.f32 %v216, %v253
  %v259 = vtanh.pop %v258
  %s260 = scalar_lea.vmem %s0, 32
  %v261 = vld [vmem:[%s260] sm:$0xff]
  %v262 = vpack.c.bf16 %v259, %v259
  %263 = vmatprep.subr.bf16.mxu0 0
  %264 = vmatpush1.bf16.msra.mxu0 %v67
  %265 = vmatprep.subr.bf16.mxu0 0
  %266 = vmatpush1.bf16.msra.mxu0 %v68
  %267 = vmatprep.subr.bf16.mxu0 0
  %268 = vmatpush1.bf16.msra.mxu0 %v69
  %269 = vmatprep.subr.bf16.mxu0 0
  %270 = vmatpush1.bf16.msra.mxu0 %v70
  %271 = vmatprep.subr.bf16.mxu0 0
  %272 = vmatpush1.bf16.msra.mxu0 %v71
  %273 = vmatprep.subr.bf16.mxu0 0
  %274 = vmatpush1.bf16.msra.mxu0 %v72
  %275 = vmatprep.subr.bf16.mxu0 0
  %276 = vmatpush1.bf16.msra.mxu0 %v73
  %277 = vmatprep.subr.bf16.mxu0 0
  %278 = vmatpush1.bf16.msra.mxu0 %v74
  %279 = vmatprep.subr.bf16.mxu0 0
  %280 = vmatpush1.bf16.msra.mxu0 0
  %281 = vmatprep.subr.bf16.mxu0 0
  %282 = vmatpush1.bf16.msra.mxu0 0
  %283 = vmatprep.subr.bf16.mxu0 0
  %284 = vmatpush1.bf16.msra.mxu0 0
  %285 = vmatprep.subr.bf16.mxu0 0
  %286 = vmatpush1.bf16.msra.mxu0 0
  %287 = vmatprep.subr.bf16.mxu0 0
  %288 = vmatpush1.bf16.msra.mxu0 0
  %289 = vmatprep.subr.bf16.mxu0 0
  %290 = vmatpush1.bf16.msra.mxu0 0
  %291 = vmatprep.subr.bf16.mxu0 0
  %292 = vmatpush1.bf16.msra.mxu0 0
  %293 = vmatprep.subr.bf16.mxu0 0
  %294 = vmatpush1.bf16.msra.mxu0 0
  %295 = vmatprep.mubr.bf16.mxu0 0
  %296 = vmatmul.mubr.bf16.gmra.mrb[0].mxu0 %v262
  %v297 = vpop.f32.mrb[0].mxu0
  %v298 = vadd.f32 0.0, %v297
  %v299 = vpop.f32.mrb[0].mxu0
  %v300 = vpop.f32.mrb[0].mxu0
  %v301 = vpop.f32.mrb[0].mxu0
  %302 = vdwg.mxu0
  %v303 = vadd.f32 %v261, %v298
  %v304 = vtanh.pop %v303
  %s305 = scalar_lea.vmem %s0, 40
  %v306 = vld [vmem:[%s305] sm:$0xff]
  %v307 = vpack.c.bf16 %v304, %v304
  %308 = vmatprep.subr.bf16.mxu0 0
  %309 = vmatpush1.bf16.msra.mxu0 %v67
  %310 = vmatprep.subr.bf16.mxu0 0
  %311 = vmatpush1.bf16.msra.mxu0 %v68
  %312 = vmatprep.subr.bf16.mxu0 0
  %313 = vmatpush1.bf16.msra.mxu0 %v69
  %314 = vmatprep.subr.bf16.mxu0 0
  %315 = vmatpush1.bf16.msra.mxu0 %v70
  %316 = vmatprep.subr.bf16.mxu0 0
  %317 = vmatpush1.bf16.msra.mxu0 %v71
  %318 = vmatprep.subr.bf16.mxu0 0
  %319 = vmatpush1.bf16.msra.mxu0 %v72
  %320 = vmatprep.subr.bf16.mxu0 0
  %321 = vmatpush1.bf16.msra.mxu0 %v73
  %322 = vmatprep.subr.bf16.mxu0 0
  %323 = vmatpush1.bf16.msra.mxu0 %v74
  %324 = vmatprep.subr.bf16.mxu0 0
  %325 = vmatpush1.bf16.msra.mxu0 0
  %326 = vmatprep.subr.bf16.mxu0 0
  %327 = vmatpush1.bf16.msra.mxu0 0
  %328 = vmatprep.subr.bf16.mxu0 0
  %329 = vmatpush1.bf16.msra.mxu0 0
  %330 = vmatprep.subr.bf16.mxu0 0
  %331 = vmatpush1.bf16.msra.mxu0 0
  %332 = vmatprep.subr.bf16.mxu0 0
  %333 = vmatpush1.bf16.msra.mxu0 0
  %334 = vmatprep.subr.bf16.mxu0 0
  %335 = vmatpush1.bf16.msra.mxu0 0
  %336 = vmatprep.subr.bf16.mxu0 0
  %337 = vmatpush1.bf16.msra.mxu0 0
  %338 = vmatprep.subr.bf16.mxu0 0
  %339 = vmatpush1.bf16.msra.mxu0 0
  %340 = vmatprep.mubr.bf16.mxu0 0
  %341 = vmatmul.mubr.bf16.gmra.mrb[0].mxu0 %v307
  %v342 = vpop.f32.mrb[0].mxu0
  %v343 = vadd.f32 0.0, %v342
  %v344 = vpop.f32.mrb[0].mxu0
  %v345 = vpop.f32.mrb[0].mxu0
  %v346 = vpop.f32.mrb[0].mxu0
  %347 = vdwg.mxu0
  %v348 = vadd.f32 %v306, %v343
  %v349 = vtanh.pop %v348
  %s350 = scalar_lea.vmem %s0, 48
  %v351 = vld [vmem:[%s350] sm:$0xff]
  %v352 = vpack.c.bf16 %v349, %v349
  %353 = vmatprep.subr.bf16.mxu0 0
  %354 = vmatpush1.bf16.msra.mxu0 %v67
  %355 = vmatprep.subr.bf16.mxu0 0
  %356 = vmatpush1.bf16.msra.mxu0 %v68
  %357 = vmatprep.subr.bf16.mxu0 0
  %358 = vmatpush1.bf16.msra.mxu0 %v69
  %359 = vmatprep.subr.bf16.mxu0 0
  %360 = vmatpush1.bf16.msra.mxu0 %v70
  %361 = vmatprep.subr.bf16.mxu0 0
  %362 = vmatpush1.bf16.msra.mxu0 %v71
  %363 = vmatprep.subr.bf16.mxu0 0
  %364 = vmatpush1.bf16.msra.mxu0 %v72
  %365 = vmatprep.subr.bf16.mxu0 0
  %366 = vmatpush1.bf16.msra.mxu0 %v73
  %367 = vmatprep.subr.bf16.mxu0 0
  %368 = vmatpush1.bf16.msra.mxu0 %v74
  %369 = vmatprep.subr.bf16.mxu0 0
  %370 = vmatpush1.bf16.msra.mxu0 0
  %371 = vmatprep.subr.bf16.mxu0 0
  %372 = vmatpush1.bf16.msra.mxu0 0
  %373 = vmatprep.subr.bf16.mxu0 0
  %374 = vmatpush1.bf16.msra.mxu0 0
  %375 = vmatprep.subr.bf16.mxu0 0
  %376 = vmatpush1.bf16.msra.mxu0 0
  %377 = vmatprep.subr.bf16.mxu0 0
  %378 = vmatpush1.bf16.msra.mxu0 0
  %379 = vmatprep.subr.bf16.mxu0 0
  %380 = vmatpush1.bf16.msra.mxu0 0
  %381 = vmatprep.subr.bf16.mxu0 0
  %382 = vmatpush1.bf16.msra.mxu0 0
  %383 = vmatprep.subr.bf16.mxu0 0
  %384 = vmatpush1.bf16.msra.mxu0 0
  %385 = vmatprep.mubr.bf16.mxu0 0
  %386 = vmatmul.mubr.bf16.gmra.mrb[0].mxu0 %v352
  %v387 = vpop.f32.mrb[0].mxu0
  %v388 = vadd.f32 0.0, %v387
  %v389 = vpop.f32.mrb[0].mxu0
  %v390 = vpop.f32.mrb[0].mxu0
  %v391 = vpop.f32.mrb[0].mxu0
  %392 = vdwg.mxu0
  %v393 = vadd.f32 %v351, %v388
  %v394 = vtanh.pop %v393
  %s395 = scalar_lea.vmem %s0, 56
  %v396 = vld [vmem:[%s395] sm:$0xff]
  %v397 = vpack.c.bf16 %v394, %v394
  %398 = vmatprep.subr.bf16.mxu0 0
  %399 = vmatpush1.bf16.msra.mxu0 %v67
  %400 = vmatprep.subr.bf16.mxu0 0
  %401 = vmatpush1.bf16.msra.mxu0 %v68
  %402 = vmatprep.subr.bf16.mxu0 0
  %403 = vmatpush1.bf16.msra.mxu0 %v69
  %404 = vmatprep.subr.bf16.mxu0 0
  %405 = vmatpush1.bf16.msra.mxu0 %v70
  %406 = vmatprep.subr.bf16.mxu0 0
  %407 = vmatpush1.bf16.msra.mxu0 %v71
  %408 = vmatprep.subr.bf16.mxu0 0
  %409 = vmatpush1.bf16.msra.mxu0 %v72
  %410 = vmatprep.subr.bf16.mxu0 0
  %411 = vmatpush1.bf16.msra.mxu0 %v73
  %412 = vmatprep.subr.bf16.mxu0 0
  %413 = vmatpush1.bf16.msra.mxu0 %v74
  %414 = vmatprep.subr.bf16.mxu0 0
  %415 = vmatpush1.bf16.msra.mxu0 0
  %416 = vmatprep.subr.bf16.mxu0 0
  %417 = vmatpush1.bf16.msra.mxu0 0
  %418 = vmatprep.subr.bf16.mxu0 0
  %419 = vmatpush1.bf16.msra.mxu0 0
  %420 = vmatprep.subr.bf16.mxu0 0
  %421 = vmatpush1.bf16.msra.mxu0 0
  %422 = vmatprep.subr.bf16.mxu0 0
  %423 = vmatpush1.bf16.msra.mxu0 0
  %424 = vmatprep.subr.bf16.mxu0 0
  %425 = vmatpush1.bf16.msra.mxu0 0
  %426 = vmatprep.subr.bf16.mxu0 0
  %427 = vmatpush1.bf16.msra.mxu0 0
  %428 = vmatprep.subr.bf16.mxu0 0
  %429 = vmatpush1.bf16.msra.mxu0 0
  %430 = vmatprep.mubr.bf16.mxu0 0
  %431 = vmatmul.mubr.bf16.gmra.mrb[0].mxu0 %v397
  %v432 = vpop.f32.mrb[0].mxu0
  %v433 = vadd.f32 0.0, %v432
  %v434 = vpop.f32.mrb[0].mxu0
  %v435 = vpop.f32.mrb[0].mxu0
  %v436 = vpop.f32.mrb[0].mxu0
  %437 = vdwg.mxu0
  %v438 = vadd.f32 %v396, %v433
  %v439 = vtanh.pop %v438
  %v440 = vpack.c.bf16 %v439, %v439
  %v441 = vld [vmem:[%s2] sm:$0xf]
  %v442 = vld [vmem:[%s2 + $0x4] sm:$0xf]
  %v443 = vld [vmem:[%s2 + $0x8] sm:$0xf]
  %v444 = vld [vmem:[%s2 + $0xc] sm:$0xf]
  %v445 = vld [vmem:[%s2 + $0x10] sm:$0xf]
  %v446 = vld [vmem:[%s2 + $0x14] sm:$0xf]
  %v447 = vld [vmem:[%s2 + $0x18] sm:$0xf]
  %v448 = vld [vmem:[%s2 + $0x1c] sm:$0xf]
  %v449 = vld [vmem:[%s2 + $0x20] sm:$0xf]
  %v450 = vld [vmem:[%s2 + $0x24] sm:$0xf]
  %v451 = vld [vmem:[%s2 + $0x28] sm:$0xf]
  %v452 = vld [vmem:[%s2 + $0x2c] sm:$0xf]
  %v453 = vld [vmem:[%s2 + $0x30] sm:$0xf]
  %v454 = vld [vmem:[%s2 + $0x34] sm:$0xf]
  %v455 = vld [vmem:[%s2 + $0x38] sm:$0xf]
  %v456 = vld [vmem:[%s2 + $0x3c] sm:$0xf]
  %v457 = vld [vmem:[%s3] sm:$0x1]
  %v459 = vlaneseq
  %v460 = vshrl.u32 %v459, 7
  %v461 = vsub.s32 0, %v460
  %v462 = vrot.slane %v457, %v461
  %v480 = vunpack.c.l.b16 %v441
  %v481 = vunpack.c.l.b16 %v442
  %v482 = vunpack.c.l.b16 %v443
  %v483 = vunpack.c.l.b16 %v444
  %v484 = vunpack.c.l.b16 %v445
  %v485 = vunpack.c.l.b16 %v446
  %v486 = vunpack.c.l.b16 %v447
  %v487 = vunpack.c.l.b16 %v448
  %v488 = vunpack.c.l.b16 %v449
  %v489 = vunpack.c.l.b16 %v450
  %v490 = vunpack.c.l.b16 %v451
  %v491 = vunpack.c.l.b16 %v452
  %v492 = vunpack.c.l.b16 %v453
  %v493 = vunpack.c.l.b16 %v454
  %v494 = vunpack.c.l.b16 %v455
  %v495 = vunpack.c.l.b16 %v456
  %v496 = vpack.c.b16 %v481, %v480
  %v497 = vpack.c.b16 %v483, %v482
  %v498 = vpack.c.b16 %v485, %v484
  %v499 = vpack.c.b16 %v487, %v486
  %v500 = vpack.c.b16 %v489, %v488
  %v501 = vpack.c.b16 %v491, %v490
  %v502 = vpack.c.b16 %v493, %v492
  %v503 = vpack.c.b16 %v495, %v494
  %512 = vmatprep.subr.bf16.mxu0 0
  %513 = vmatpush1.bf16.msra.mxu0 %v496
  %514 = vmatprep.subr.bf16.mxu0 0
  %515 = vmatpush1.bf16.msra.mxu0 %v497
  %516 = vmatprep.subr.bf16.mxu0 0
  %517 = vmatpush1.bf16.msra.mxu0 %v498
  %518 = vmatprep.subr.bf16.mxu0 0
  %519 = vmatpush1.bf16.msra.mxu0 %v499
  %520 = vmatprep.subr.bf16.mxu0 0
  %521 = vmatpush1.bf16.msra.mxu0 %v500
  %522 = vmatprep.subr.bf16.mxu0 0
  %523 = vmatpush1.bf16.msra.mxu0 %v501
  %524 = vmatprep.subr.bf16.mxu0 0
  %525 = vmatpush1.bf16.msra.mxu0 %v502
  %526 = vmatprep.subr.bf16.mxu0 0
  %527 = vmatpush1.bf16.msra.mxu0 %v503
  %528 = vmatprep.subr.bf16.mxu0 0
  %529 = vmatpush1.bf16.msra.mxu0 0
  %530 = vmatprep.subr.bf16.mxu0 0
  %531 = vmatpush1.bf16.msra.mxu0 0
  %532 = vmatprep.subr.bf16.mxu0 0
  %533 = vmatpush1.bf16.msra.mxu0 0
  %534 = vmatprep.subr.bf16.mxu0 0
  %535 = vmatpush1.bf16.msra.mxu0 0
  %536 = vmatprep.subr.bf16.mxu0 0
  %537 = vmatpush1.bf16.msra.mxu0 0
  %538 = vmatprep.subr.bf16.mxu0 0
  %539 = vmatpush1.bf16.msra.mxu0 0
  %540 = vmatprep.subr.bf16.mxu0 0
  %541 = vmatpush1.bf16.msra.mxu0 0
  %542 = vmatprep.subr.bf16.mxu0 0
  %543 = vmatpush1.bf16.msra.mxu0 0
  %544 = vmatprep.mubr.bf16.mxu0 0
  %545 = vmatmul.mubr.bf16.gmra.mrb[0].mxu0 %v440
  %v546 = vpop.f32.mrb[0].mxu0
  %v547 = vadd.f32 %v462, %v546
  %v548 = vpop.f32.mrb[0].mxu0
  %v549 = vpop.f32.mrb[0].mxu0
  %v550 = vpop.f32.mrb[0].mxu0
  %551 = vdwg.mxu0
  %552 = vst [vmem:[%s4] sm:$0xff] %v547
  // Predicated region
  $region18: #{rnn_forward.1} parent=0 // pred_check
    _
  $region19: #{rnn_forward.1} parent=0 // pred_check_branch
    %554 = sbr.rel (0) target = $region21
  $region20: #{rnn_forward.1} parent=0 // pred_region
    _
  $region21: #{rnn_forward.1} parent=0 // pred_fallthru
    _
  // Predicated region
  $region22: #{rnn_forward.1} parent=0 // pred_check
    _
  $region23: #{rnn_forward.1} parent=0 // pred_check_branch
    %556 = sbr.rel (0) target = $region25
  $region24: #{rnn_forward.1} parent=0 // pred_region
    _
  $region25: #{rnn_forward.1} parent=0 // pred_fallthru
    _

</llo_original>
